<compile_context>
chip_gen: v5e
topology: v5e:2x2
jax: 0.10.0
libtpu: 0.0.40
codegen_flags: <defaults>
</compile_context>

<pallas_src>
import functools

import jax
import jax.numpy as jnp
from jax.experimental import pallas as pl
from jax.experimental.pallas import tpu as pltpu


def _round_up(x, m):
    return (x + m - 1) // m * m


def _arm_kernel(idx_ref,   # VMEM: (TB, 1)   int32 clamped embedding row ids
                emb_ref,   # VMEM: (NEp, Dp) bf16  embedding table (zero-padded)
                w1_ref,    # VMEM: (Dp, Hp)  bf16  BN-folded first-layer weight
                b1_ref,    # VMEM: (1, Hp)   f32   BN-folded first-layer bias
                w2_ref,    # VMEM: (1, Hp)   f32   second-layer weight as a row
                b2_ref,    # SMEM: (1, 1)    f32   second-layer bias
                o_ref):    # VMEM out: (TB, 1) f32
    tb = idx_ref.shape[0]
    ne = emb_ref.shape[0]
    hp = w1_ref.shape[1]
    hc = 128                      # epilogue chunk width (lanes)

    # Fused embedding gather as a one-hot MXU matmul.  The table is VMEM
    # resident, so there are no per-row DMAs (the dominant cost previously).
    # Ids were clamped in the wrapper; padded table rows are zero.
    ids = idx_ref[...]                                             # (TB, 1)
    onehot = (ids == jax.lax.broadcasted_iota(jnp.int32, (tb, ne), 1)
              ).astype(jnp.bfloat16)                               # (TB, NEp)
    x = jnp.dot(onehot, emb_ref[...],
                preferred_element_type=jnp.float32)                # (TB, Dp) f32
    x = x.astype(jnp.bfloat16)                                     # bf16 MXU feed
    # TODO(synk): for large embedding tables that cannot stay VMEM-resident,
    #             fall back to a double-buffered DMA row gather (fori_loop).

    # TODO(synk): Dropout(p=0.5) is identity in eval mode; training-mode RNG
    #             mask/scale and BN batch statistics are intentionally omitted.

    # Linear(D->512) (+ folded BN2) -> Tanh -> Linear(512->1), computed in
    # 128-lane H-chunks with a running (TB, 1) accumulator so the full
    # (TB, Hp) f32 activation is never materialized (keeps vreg pressure low).
    acc = jnp.full((tb, 1), b2_ref[0, 0], jnp.float32)
    for c in range(hp // hc):                 # short static loop (Hp / 128)
        sl = slice(c * hc, (c + 1) * hc)      # static ref slices: free views
        zc = jnp.dot(x, w1_ref[:, sl],
                     preferred_element_type=jnp.float32) + b1_ref[:, sl]
        acc = acc + jnp.sum(jnp.tanh(zc) * w2_ref[:, sl],          # EUP + VPU
                            axis=-1, keepdims=True)                # XLU reduce

    # TODO(synk): a lane-dense (1, TB) output row (XLU transpose of acc) is a
    #             further minor win; kept as a (TB, 1) store for robustness.
    o_ref[...] = acc.astype(o_ref.dtype)


def fold_arm_params(params, eps=1e-5, lane=128):
    """One-time (load-time) preparation:
      * fold both eval-mode BatchNorms into the first Linear,
      * zero-pad num_emb / D / H to lane multiples (unmasked MXU / iota),
      * cast MXU operands (embedding table, folded W1) to bf16."""
    emb = params["emb"].astype(jnp.float32)
    w1 = params["w1"].astype(jnp.float32)
    b1 = params["b1"].astype(jnp.float32)
    w2 = params["w2"].astype(jnp.float32)
    b2 = params["b2"].astype(jnp.float32)
    NE, D = emb.shape
    H = w1.shape[1]

    bn1_s = params["bn1_gamma"] / jnp.sqrt(params["bn1_var"] + eps)
    bn1_b = params["bn1_beta"] - params["bn1_mean"] * bn1_s
    bn2_s = params["bn2_gamma"] / jnp.sqrt(params["bn2_var"] + eps)
    bn2_b = params["bn2_beta"] - params["bn2_mean"] * bn2_s

    # ((x*s1 + t1) @ W1 + b1) * s2 + t2  ==  x @ W1' + b1'
    w1f = (bn1_s[:, None] * w1) * bn2_s[None, :]
    b1f = (bn1_b @ w1 + b1) * bn2_s + bn2_b

    NEp = _round_up(NE, lane)
    Dp = _round_up(D, lane)
    Hp = _round_up(H, lane)
    emb = jnp.pad(emb, ((0, NEp - NE), (0, Dp - D)))
    w1f = jnp.pad(w1f, ((0, Dp - D), (0, Hp - H)))
    b1f = jnp.pad(b1f, (0, Hp - H))
    w2r = jnp.pad(w2[:, 0], (0, Hp - H))

    return {
        "emb": emb.astype(jnp.bfloat16),       # (NEp, Dp) bf16
        "w1f": w1f.astype(jnp.bfloat16),       # (Dp, Hp)  bf16
        "b1f": b1f.reshape(1, Hp),             # (1, Hp)   f32
        "w2r": w2r.reshape(1, Hp),             # (1, Hp)   f32
        "b2": b2.reshape(1, 1),                # (1, 1)    f32 -> SMEM
        "num_emb": jnp.int32(NE),              # for id clamping
    }


@functools.partial(jax.jit, static_argnames=("block_b",))
def network_arm_forward(popularity, folded, block_b=128):
    """popularity: int (B,) -> (B, 1) float32 (eval-mode forward)."""
    emb, w1f = folded["emb"], folded["w1f"]
    b1f, w2r, b2 = folded["b1f"], folded["w2r"], folded["b2"]
    NEp, Dp = emb.shape
    Hp = w1f.shape[1]
    B = popularity.shape[0]

    assert block_b % 128 == 0, "block_b must be a multiple of 128"
    # Single tile for small batches (block dims == full dims), else 128/256-row
    # tiles so large batches get >= 2 grid steps ("parallel" -> megacore).
    B8 = _round_up(B, 8)
    TB = B8 if B8 <= block_b else block_b
    B_pad = _round_up(B, TB)
    n_tiles = B_pad // TB

    # Clamp ids (the kernel has no runtime OOB protection) and pad the batch.
    ids = jnp.clip(popularity.astype(jnp.int32), 0, folded["num_emb"] - 1)
    ids = jnp.zeros((B_pad,), jnp.int32).at[:B].set(ids).reshape(B_pad, 1)

    out = pl.pallas_call(
        _arm_kernel,
        out_shape=jax.ShapeDtypeStruct((B_pad, 1), jnp.float32),
        grid_spec=pltpu.PrefetchScalarGridSpec(
            num_scalar_prefetch=0,
            grid=(n_tiles,),
            in_specs=[
                pl.BlockSpec((TB, 1), lambda i: (i, 0)),            # ids
                pl.BlockSpec((NEp, Dp), lambda i: (0, 0)),          # emb (VMEM)
                pl.BlockSpec((Dp, Hp), lambda i: (0, 0)),           # w1f (VMEM)
                pl.BlockSpec((1, Hp), lambda i: (0, 0)),            # b1f
                pl.BlockSpec((1, Hp), lambda i: (0, 0)),            # w2r
                pl.BlockSpec(memory_space=pltpu.MemorySpace.SMEM),  # b2
            ],
            out_specs=pl.BlockSpec((TB, 1), lambda i: (i, 0)),
        ),
        compiler_params=pltpu.CompilerParams(
            dimension_semantics=("parallel",)),
    )(ids, emb, w1f, b1f, w2r, b2)

    return out[:B]


def init_params(key, num_embeddings, emb_dim, hidden=512):
    """Deterministic synthetic parameters (non-trivial BN stats to exercise
    the folding path)."""
    ks = jax.random.split(key, 12)
    lim1 = 1.0 / jnp.sqrt(emb_dim)
    lim2 = 1.0 / jnp.sqrt(hidden)
    return {
        "emb": jax.random.normal(ks[0], (num_embeddings, emb_dim), jnp.float32),
        "bn1_gamma": jax.random.uniform(ks[1], (emb_dim,), jnp.float32, 0.5, 1.5),
        "bn1_beta": 0.1 * jax.random.normal(ks[2], (emb_dim,), jnp.float32),
        "bn1_mean": 0.5 * jax.random.normal(ks[3], (emb_dim,), jnp.float32),
        "bn1_var": jax.random.uniform(ks[4], (emb_dim,), jnp.float32, 0.5, 1.5),
        "w1": jax.random.uniform(ks[5], (emb_dim, hidden), jnp.float32, -lim1, lim1),
        "b1": jax.random.uniform(ks[6], (hidden,), jnp.float32, -lim1, lim1),
        "bn2_gamma": jax.random.uniform(ks[7], (hidden,), jnp.float32, 0.5, 1.5),
        "bn2_beta": 0.1 * jax.random.normal(ks[8], (hidden,), jnp.float32),
        "bn2_mean": 0.2 * jax.random.normal(ks[9], (hidden,), jnp.float32),
        "bn2_var": jax.random.uniform(ks[10], (hidden,), jnp.float32, 0.5, 1.5),
        "w2": jax.random.uniform(ks[11], (hidden, 1), jnp.float32, -lim2, lim2),
        "b2": jnp.full((1,), 0.01, jnp.float32),
    }


if __name__ == "__main__":
    # Setting_Popularity = (num_embeddings, embedding_dim)
    NUM_EMB, EMB_DIM, HIDDEN = 100, 32, 512
    BATCH = 8

    key = jax.random.PRNGKey(0)
    k_params, k_idx, k_idx2 = jax.random.split(key, 3)
    params = init_params(k_params, NUM_EMB, EMB_DIM, HIDDEN)
    folded = fold_arm_params(params)       # one-time BN folding / padding / bf16

    def reference(pop):
        eps = 1e-5
        x = jnp.take(params["emb"], pop, axis=0)
        h = (x - params["bn1_mean"]) / jnp.sqrt(params["bn1_var"] + eps) \
            * params["bn1_gamma"] + params["bn1_beta"]
        z = h @ params["w1"] + params["b1"]
        z = (z - params["bn2_mean"]) / jnp.sqrt(params["bn2_var"] + eps) \
            * params["bn2_gamma"] + params["bn2_beta"]
        return jnp.tanh(z) @ params["w2"] + params["b2"]

    # Small batch (single tile).
    popularity = jax.random.randint(k_idx, (BATCH,), 0, NUM_EMB, dtype=jnp.int32)
    out = jax.block_until_ready(network_arm_forward(popularity, folded))
    assert out.shape == (BATCH, 1) and out.dtype == jnp.float32
    ref = reference(popularity)
    # bf16 MXU operands (per perf review) -> slightly relaxed tolerance vs f32.
    assert jnp.allclose(out, ref, atol=2e-2, rtol=2e-2), \
        f"max abs diff = {jnp.max(jnp.abs(out - ref))}"

    # Larger batch exercising the multi-tile ("parallel") grid path.
    pop2 = jax.random.randint(k_idx2, (300,), 0, NUM_EMB, dtype=jnp.int32)
    out2 = jax.block_until_ready(network_arm_forward(pop2, folded))
    assert out2.shape == (300, 1)
    ref2 = reference(pop2)
    assert jnp.allclose(out2, ref2, atol=2e-2, rtol=2e-2), \
        f"max abs diff = {jnp.max(jnp.abs(out2 - ref2))}"

    print("KERNEL_OK")
</pallas_src>

<mosaic_0001>
module attributes {stable_mosaic.version = 11 : i64} {
  func.func @_arm_kernel(%arg0: i32, %arg1: memref<8x1xi32, #tpu.memory_space<vmem>>, %arg2: memref<128x128xbf16, #tpu.memory_space<vmem>>, %arg3: memref<128x512xbf16, #tpu.memory_space<vmem>>, %arg4: memref<1x512xf32, #tpu.memory_space<vmem>>, %arg5: memref<1x512xf32, #tpu.memory_space<vmem>>, %arg6: memref<1x1xf32, #tpu.memory_space<smem>>, %arg7: memref<8x1xf32, #tpu.memory_space<vmem>>) attributes {dimension_semantics = [#tpu.dimension_semantics<parallel>], iteration_bounds = array<i64: 1>, scalar_prefetch = 0 : i64, scratch_operands = 0 : i64, tpu.core_type = #tpu.core_type<tc>, window_params = [{transform_indices = @transform_0, window_bounds = array<i64: 8, 1>}, {pipeline_mode = #tpu.pipeline_mode<synchronous>, transform_indices = @transform_1, window_bounds = array<i64: 128, 128>}, {pipeline_mode = #tpu.pipeline_mode<synchronous>, transform_indices = @transform_2, window_bounds = array<i64: 128, 512>}, {pipeline_mode = #tpu.pipeline_mode<synchronous>, transform_indices = @transform_3, window_bounds = array<i64: 1, 512>}, {pipeline_mode = #tpu.pipeline_mode<synchronous>, transform_indices = @transform_4, window_bounds = array<i64: 1, 512>}, {transform_indices = @transform_5, window_bounds = array<i64: 1, 1>}, {transform_indices = @transform_6, window_bounds = array<i64: 8, 1>}]} {
    %c0 = arith.constant 0 : index
    %c0_0 = arith.constant 0 : index
    %0 = vector.load %arg1[%c0, %c0_0] : memref<8x1xi32, #tpu.memory_space<vmem>>, vector<8x1xi32>
    %1 = tpu.iota {dimensions = array<i32: 1>} : vector<8x128xi32>
    %2 = vector.broadcast %0 : vector<8x1xi32> to vector<8x128xi32>
    %3 = arith.cmpi eq, %2, %1 : vector<8x128xi32>
    %4 = arith.extui %3 : vector<8x128xi1> to vector<8x128xi32>
    %5 = arith.sitofp %4 : vector<8x128xi32> to vector<8x128xf32>
    %6 = arith.truncf %5 : vector<8x128xf32> to vector<8x128xbf16>
    %c0_1 = arith.constant 0 : index
    %c0_2 = arith.constant 0 : index
    %7 = vector.load %arg2[%c0_1, %c0_2] : memref<128x128xbf16, #tpu.memory_space<vmem>>, vector<128x128xbf16>
    %cst = arith.constant dense<0.000000e+00> : vector<8x128xf32>
    %8 = tpu.matmul %6, %7, %cst {dimension_numbers = #tpu.dot_dimension_numbers<[1], [0], [0], [1], [0, 0, 1, 1], [], []>} : vector<8x128xbf16>, vector<128x128xbf16>, vector<8x128xf32> -> vector<8x128xf32>
    %9 = arith.truncf %8 : vector<8x128xf32> to vector<8x128xbf16>
    %c0_3 = arith.constant 0 : index
    %c0_4 = arith.constant 0 : index
    %10 = memref.load %arg6[%c0_3, %c0_4] : memref<1x1xf32, #tpu.memory_space<smem>>
    %11 = vector.broadcast %10 : f32 to vector<8x1xf32>
    %c0_5 = arith.constant 0 : index
    %c0_6 = arith.constant 0 : index
    %12 = vector.load %arg3[%c0_5, %c0_6] : memref<128x512xbf16, #tpu.memory_space<vmem>>, vector<128x128xbf16>
    %cst_7 = arith.constant dense<0.000000e+00> : vector<8x128xf32>
    %13 = tpu.matmul %9, %12, %cst_7 {dimension_numbers = #tpu.dot_dimension_numbers<[1], [0], [0], [1], [0, 0, 1, 1], [], []>} : vector<8x128xbf16>, vector<128x128xbf16>, vector<8x128xf32> -> vector<8x128xf32>
    %c0_8 = arith.constant 0 : index
    %c0_9 = arith.constant 0 : index
    %14 = vector.load %arg4[%c0_8, %c0_9] : memref<1x512xf32, #tpu.memory_space<vmem>>, vector<1x128xf32>
    %15 = vector.broadcast %14 : vector<1x128xf32> to vector<8x128xf32>
    %16 = arith.addf %13, %15 : vector<8x128xf32>
    %17 = math.tanh %16 : vector<8x128xf32>
    %c0_10 = arith.constant 0 : index
    %c0_11 = arith.constant 0 : index
    %18 = vector.load %arg5[%c0_10, %c0_11] : memref<1x512xf32, #tpu.memory_space<vmem>>, vector<1x128xf32>
    %19 = vector.broadcast %18 : vector<1x128xf32> to vector<8x128xf32>
    %20 = arith.mulf %17, %19 : vector<8x128xf32>
    %cst_12 = arith.constant dense<0.000000e+00> : vector<8xf32>
    %21 = vector.multi_reduction <add>, %20, %cst_12 [1] : vector<8x128xf32> to vector<8xf32>
    %22 = vector.shape_cast %21 : vector<8xf32> to vector<8x1xf32>
    %23 = arith.addf %11, %22 : vector<8x1xf32>
    %c0_13 = arith.constant 0 : index
    %c128 = arith.constant 128 : index
    %24 = vector.load %arg3[%c0_13, %c128] : memref<128x512xbf16, #tpu.memory_space<vmem>>, vector<128x128xbf16>
    %cst_14 = arith.constant dense<0.000000e+00> : vector<8x128xf32>
    %25 = tpu.matmul %9, %24, %cst_14 {dimension_numbers = #tpu.dot_dimension_numbers<[1], [0], [0], [1], [0, 0, 1, 1], [], []>} : vector<8x128xbf16>, vector<128x128xbf16>, vector<8x128xf32> -> vector<8x128xf32>
    %c0_15 = arith.constant 0 : index
    %c128_16 = arith.constant 128 : index
    %26 = vector.load %arg4[%c0_15, %c128_16] : memref<1x512xf32, #tpu.memory_space<vmem>>, vector<1x128xf32>
    %27 = vector.broadcast %26 : vector<1x128xf32> to vector<8x128xf32>
    %28 = arith.addf %25, %27 : vector<8x128xf32>
    %29 = math.tanh %28 : vector<8x128xf32>
    %c0_17 = arith.constant 0 : index
    %c128_18 = arith.constant 128 : index
    %30 = vector.load %arg5[%c0_17, %c128_18] : memref<1x512xf32, #tpu.memory_space<vmem>>, vector<1x128xf32>
    %31 = vector.broadcast %30 : vector<1x128xf32> to vector<8x128xf32>
    %32 = arith.mulf %29, %31 : vector<8x128xf32>
    %cst_19 = arith.constant dense<0.000000e+00> : vector<8xf32>
    %33 = vector.multi_reduction <add>, %32, %cst_19 [1] : vector<8x128xf32> to vector<8xf32>
    %34 = vector.shape_cast %33 : vector<8xf32> to vector<8x1xf32>
    %35 = arith.addf %23, %34 : vector<8x1xf32>
    %c0_20 = arith.constant 0 : index
    %c256 = arith.constant 256 : index
    %36 = vector.load %arg3[%c0_20, %c256] : memref<128x512xbf16, #tpu.memory_space<vmem>>, vector<128x128xbf16>
    %cst_21 = arith.constant dense<0.000000e+00> : vector<8x128xf32>
    %37 = tpu.matmul %9, %36, %cst_21 {dimension_numbers = #tpu.dot_dimension_numbers<[1], [0], [0], [1], [0, 0, 1, 1], [], []>} : vector<8x128xbf16>, vector<128x128xbf16>, vector<8x128xf32> -> vector<8x128xf32>
    %c0_22 = arith.constant 0 : index
    %c256_23 = arith.constant 256 : index
    %38 = vector.load %arg4[%c0_22, %c256_23] : memref<1x512xf32, #tpu.memory_space<vmem>>, vector<1x128xf32>
    %39 = vector.broadcast %38 : vector<1x128xf32> to vector<8x128xf32>
    %40 = arith.addf %37, %39 : vector<8x128xf32>
    %41 = math.tanh %40 : vector<8x128xf32>
    %c0_24 = arith.constant 0 : index
    %c256_25 = arith.constant 256 : index
    %42 = vector.load %arg5[%c0_24, %c256_25] : memref<1x512xf32, #tpu.memory_space<vmem>>, vector<1x128xf32>
    %43 = vector.broadcast %42 : vector<1x128xf32> to vector<8x128xf32>
    %44 = arith.mulf %41, %43 : vector<8x128xf32>
    %cst_26 = arith.constant dense<0.000000e+00> : vector<8xf32>
    %45 = vector.multi_reduction <add>, %44, %cst_26 [1] : vector<8x128xf32> to vector<8xf32>
    %46 = vector.shape_cast %45 : vector<8xf32> to vector<8x1xf32>
    %47 = arith.addf %35, %46 : vector<8x1xf32>
    %c0_27 = arith.constant 0 : index
    %c384 = arith.constant 384 : index
    %48 = vector.load %arg3[%c0_27, %c384] : memref<128x512xbf16, #tpu.memory_space<vmem>>, vector<128x128xbf16>
    %cst_28 = arith.constant dense<0.000000e+00> : vector<8x128xf32>
    %49 = tpu.matmul %9, %48, %cst_28 {dimension_numbers = #tpu.dot_dimension_numbers<[1], [0], [0], [1], [0, 0, 1, 1], [], []>} : vector<8x128xbf16>, vector<128x128xbf16>, vector<8x128xf32> -> vector<8x128xf32>
    %c0_29 = arith.constant 0 : index
    %c384_30 = arith.constant 384 : index
    %50 = vector.load %arg4[%c0_29, %c384_30] : memref<1x512xf32, #tpu.memory_space<vmem>>, vector<1x128xf32>
    %51 = vector.broadcast %50 : vector<1x128xf32> to vector<8x128xf32>
    %52 = arith.addf %49, %51 : vector<8x128xf32>
    %53 = math.tanh %52 : vector<8x128xf32>
    %c0_31 = arith.constant 0 : index
    %c384_32 = arith.constant 384 : index
    %54 = vector.load %arg5[%c0_31, %c384_32] : memref<1x512xf32, #tpu.memory_space<vmem>>, vector<1x128xf32>
    %55 = vector.broadcast %54 : vector<1x128xf32> to vector<8x128xf32>
    %56 = arith.mulf %53, %55 : vector<8x128xf32>
    %cst_33 = arith.constant dense<0.000000e+00> : vector<8xf32>
    %57 = vector.multi_reduction <add>, %56, %cst_33 [1] : vector<8x128xf32> to vector<8xf32>
    %58 = vector.shape_cast %57 : vector<8xf32> to vector<8x1xf32>
    %59 = arith.addf %47, %58 : vector<8x1xf32>
    %c0_34 = arith.constant 0 : index
    %c0_35 = arith.constant 0 : index
    %60 = vector.load %arg7[%c0_34, %c0_35] : memref<8x1xf32, #tpu.memory_space<vmem>>, vector<8x1xf32>
    tpu.vector_store %arg7[%c0_34, %c0_35], %59 {strides = array<i32>} : memref<8x1xf32, #tpu.memory_space<vmem>>, vector<8x1xf32>,
    return
  }
  func.func @transform_0(%arg0: i32) -> (i32, i32) {
    %c0_i32 = arith.constant 0 : i32
    %c0_i32_0 = arith.constant 0 : i32
    return %arg0, %c0_i32 : i32, i32
  }
  func.func @transform_1(%arg0: i32) -> (i32, i32) {
    %c0_i32 = arith.constant 0 : i32
    %c0_i32_0 = arith.constant 0 : i32
    %c0_i32_1 = arith.constant 0 : i32
    return %c0_i32, %c0_i32_0 : i32, i32
  }
  func.func @transform_2(%arg0: i32) -> (i32, i32) {
    %c0_i32 = arith.constant 0 : i32
    %c0_i32_0 = arith.constant 0 : i32
    %c0_i32_1 = arith.constant 0 : i32
    return %c0_i32, %c0_i32_0 : i32, i32
  }
  func.func @transform_3(%arg0: i32) -> (i32, i32) {
    %c0_i32 = arith.constant 0 : i32
    %c0_i32_0 = arith.constant 0 : i32
    %c0_i32_1 = arith.constant 0 : i32
    return %c0_i32, %c0_i32_0 : i32, i32
  }
  func.func @transform_4(%arg0: i32) -> (i32, i32) {
    %c0_i32 = arith.constant 0 : i32
    %c0_i32_0 = arith.constant 0 : i32
    %c0_i32_1 = arith.constant 0 : i32
    return %c0_i32, %c0_i32_0 : i32, i32
  }
  func.func @transform_5(%arg0: i32) -> (i32, i32) {
    %c0_i32 = arith.constant 0 : i32
    %c0_i32_0 = arith.constant 0 : i32
    %c0_i32_1 = arith.constant 0 : i32
    return %c0_i32, %c0_i32_0 : i32, i32
  }
  func.func @transform_6(%arg0: i32) -> (i32, i32) {
    %c0_i32 = arith.constant 0 : i32
    %c0_i32_0 = arith.constant 0 : i32
    return %arg0, %c0_i32 : i32, i32
  }
}

</mosaic_0001>

<llo_original>
// kernel: network_arm_forward.1
$region0: #{network_arm_forward.1}
  #allocation0 [shape = 'u32[]', space=smem, size = 0x4, offset = 0x4, fixed_abs, tag = 'smem constant byte address 0x4 - core index']
  #allocation1 [shape = 'u32[72,128]{1,0:T(1,128)}', space=vmem, size = 0x9000, scoped, tag = 'internal scratch']
  #allocation2 [shape = 'f32[1,1]{1,0:T(1,128)S(6)}', space=smem, size = 0x200, scoped, tag = 'scoped memory for network_arm_forward.1']
  %s0 = inlined_call_operand.vmem [shape: s32[8,1], index: 0, kind: input, shape index: {}]
  %s1 = inlined_call_operand.hbm [shape: bf16[128,128], index: 1, kind: input, shape index: {}]
  %s2 = inlined_call_operand.hbm [shape: bf16[128,512], index: 2, kind: input, shape index: {}]
  %s3 = inlined_call_operand.vmem [shape: f32[1,512], index: 3, kind: input, shape index: {}]
  %s4 = inlined_call_operand.vmem [shape: f32[1,512], index: 4, kind: input, shape index: {}]
  %s5 = inlined_call_operand.<no memory space> [shape: f32[1,1], index: 5, kind: input, shape index: {}]
  %s6 = inlined_call_operand.vmem [shape: f32[8,1], index: 6, kind: output, shape index: {}]
  %s7 = sld [smem:[#allocation0]]
  $region42: #{network_arm_forward.1} parent=0
    _
  %s9 = ssub.s32 1, %s7
  %s10 = scalar_select 0, %s9, %s7
  %11 = sst [smem:[#allocation2]] %s5
  $region1: #{network_arm_forward.1} parent=0
    #allocation3 [shape = 'u8[32768]{0}', space=vmem, size = 0x8000, scoped, tag = 'input window, operand 1, single buffered']
    #allocation4 [shape = 's32[1]{0}', space=sflag, size = 0x4, scoped, tag = 'scoped memory for network_arm_forward.1']
    #allocation5 [shape = 'u8[131072]{0}', space=vmem, size = 0x20000, scoped, tag = 'input window, operand 2, single buffered']
    #allocation6 [shape = 's32[1]{0}', space=sflag, size = 0x4, scoped, tag = 'scoped memory for network_arm_forward.1']
    %12 = vsyncpa [#allocation4], 0
    %13 = vsyncpa [#allocation6], 0
    // Predicated region
    $region2: #{network_arm_forward.1} parent=1 // pred_check
      _
    $region3: #{network_arm_forward.1} parent=1 // pred_check_branch
      %15 = sbr.rel (0) target = $region5
    $region4: #{network_arm_forward.1} parent=1 // pred_region
      _
    $region5: #{network_arm_forward.1} parent=1 // pred_fallthru
      _
    // Predicated region
    $region6: #{network_arm_forward.1} parent=1 // pred_check
      _
    $region7: #{network_arm_forward.1} parent=1 // pred_check_branch
      %17 = sbr.rel (0) target = $region9
    $region8: #{network_arm_forward.1} parent=1 // pred_region
      %19 = vsyncadd [#allocation4], 0
      %s20 = sshll.u32 %s1, 4
      %s21 = int_to_ptr.hbm [resolvable:$true] %s20
      %s22 = sshll.u32 [#allocation3], 4
      %s23 = int_to_ptr.vmem [resolvable:$true] %s22
      %28 = dma.hbm_to_vmem [thread:$0]  %s21, 1024, %s23, [#allocation4], 64, 64, 4
    $region9: #{network_arm_forward.1} parent=1 // pred_fallthru
      _
    // Predicated region
    $region10: #{network_arm_forward.1} parent=1 // pred_check
      _
    $region11: #{network_arm_forward.1} parent=1 // pred_check_branch
      %30 = sbr.rel (0) target = $region13
    $region12: #{network_arm_forward.1} parent=1 // pred_region
      %32 = vsyncadd [#allocation6], 0
      %s33 = sshll.u32 %s2, 4
      %s34 = int_to_ptr.hbm [resolvable:$true] %s33
      %s35 = sshll.u32 [#allocation5], 4
      %s36 = int_to_ptr.vmem [resolvable:$true] %s35
      %41 = dma.hbm_to_vmem [thread:$0]  %s34, 4096, %s36, [#allocation6], 256, 256, 16
    $region13: #{network_arm_forward.1} parent=1 // pred_fallthru
      _
    // Predicated region
    $region14: #{network_arm_forward.1} parent=1 // pred_check
      _
    $region15: #{network_arm_forward.1} parent=1 // pred_check_branch
      %43 = sbr.rel (0) target = $region17
    $region16: #{network_arm_forward.1} parent=1 // pred_region
      _
    $region17: #{network_arm_forward.1} parent=1 // pred_fallthru
      _
    // Predicated region
    $region18: #{network_arm_forward.1} parent=1 // pred_check
      _
    $region19: #{network_arm_forward.1} parent=1 // pred_check_branch
      %45 = sbr.rel (0) target = $region21
    $region20: #{network_arm_forward.1} parent=1 // pred_region
      _
    $region21: #{network_arm_forward.1} parent=1 // pred_fallthru
      _
    // Predicated region
    $region22: #{network_arm_forward.1} parent=1 // pred_check
      _
    $region23: #{network_arm_forward.1} parent=1 // pred_check_branch
      %47 = sbr.rel (0) target = $region25
    $region24: #{network_arm_forward.1} parent=1 // pred_region
      _
    $region25: #{network_arm_forward.1} parent=1 // pred_fallthru
      _
    // Predicated region
    $region26: #{network_arm_forward.1} parent=1 // pred_check
      _
    $region27: #{network_arm_forward.1} parent=1 // pred_check_branch
      %49 = sbr.rel (0) target = $region29
    $region28: #{network_arm_forward.1} parent=1 // pred_region
      %51 = dma.done [#allocation4], 1024
    $region29: #{network_arm_forward.1} parent=1 // pred_fallthru
      _
    // Predicated region
    $region30: #{network_arm_forward.1} parent=1 // pred_check
      _
    $region31: #{network_arm_forward.1} parent=1 // pred_check_branch
      %53 = sbr.rel (0) target = $region33
    $region32: #{network_arm_forward.1} parent=1 // pred_region
      %55 = dma.done [#allocation6], 4096
    $region33: #{network_arm_forward.1} parent=1 // pred_fallthru
      _
    %v56 = vld [vmem:[%s0] sm:$0xff]
    %v57 = vlaneseq
    %v58 = vand.u32 %v57, 127
    %59 = vset.pattern.permute.xlu0 0
    %60 = vperm.xlu0 %59, %v56
    %v61 = vpop.permute.xlu0 %60
    %vm62 = vcmp.eq.s32.totalorder %v61, %v58
    %v63 = vsel %vm62, 1, 0
    %v64 = vcvt.s32.f32 %v63
    %v65 = vpack.c.bf16 %v64, %v64
    %v66 = vld [vmem:[#allocation3] sm:$0xf]
    %v67 = vld [vmem:[#allocation3 + $0x4] sm:$0xf]
    %v68 = vld [vmem:[#allocation3 + $0x8] sm:$0xf]
    %v69 = vld [vmem:[#allocation3 + $0xc] sm:$0xf]
    %v70 = vld [vmem:[#allocation3 + $0x10] sm:$0xf]
    %v71 = vld [vmem:[#allocation3 + $0x14] sm:$0xf]
    %v72 = vld [vmem:[#allocation3 + $0x18] sm:$0xf]
    %v73 = vld [vmem:[#allocation3 + $0x1c] sm:$0xf]
    %v74 = vld [vmem:[#allocation3 + $0x20] sm:$0xf]
    %v75 = vld [vmem:[#allocation3 + $0x24] sm:$0xf]
    %v76 = vld [vmem:[#allocation3 + $0x28] sm:$0xf]
    %v77 = vld [vmem:[#allocation3 + $0x2c] sm:$0xf]
    %v78 = vld [vmem:[#allocation3 + $0x30] sm:$0xf]
    %v79 = vld [vmem:[#allocation3 + $0x34] sm:$0xf]
    %v80 = vld [vmem:[#allocation3 + $0x38] sm:$0xf]
    %v81 = vld [vmem:[#allocation3 + $0x3c] sm:$0xf]
    %v98 = vunpack.c.l.b16 %v66
    %v99 = vunpack.c.l.b16 %v67
    %v100 = vunpack.c.l.b16 %v68
    %v101 = vunpack.c.l.b16 %v69
    %v102 = vunpack.c.l.b16 %v70
    %v103 = vunpack.c.l.b16 %v71
    %v104 = vunpack.c.l.b16 %v72
    %v105 = vunpack.c.l.b16 %v73
    %v106 = vunpack.c.l.b16 %v74
    %v107 = vunpack.c.l.b16 %v75
    %v108 = vunpack.c.l.b16 %v76
    %v109 = vunpack.c.l.b16 %v77
    %v110 = vunpack.c.l.b16 %v78
    %v111 = vunpack.c.l.b16 %v79
    %v112 = vunpack.c.l.b16 %v80
    %v113 = vunpack.c.l.b16 %v81
    %v114 = vpack.c.b16 %v99, %v98
    %v115 = vpack.c.b16 %v101, %v100
    %v116 = vpack.c.b16 %v103, %v102
    %v117 = vpack.c.b16 %v105, %v104
    %v118 = vpack.c.b16 %v107, %v106
    %v119 = vpack.c.b16 %v109, %v108
    %v120 = vpack.c.b16 %v111, %v110
    %v121 = vpack.c.b16 %v113, %v112
    %130 = vmatpush.bf16.msra.mxu0 %v121
    %131 = vmatpush.bf16.msra.mxu0 %v120
    %132 = vmatpush.bf16.msra.mxu0 %v119
    %133 = vmatpush.bf16.msra.mxu0 %v118
    %134 = vmatpush.bf16.msra.mxu0 %v117
    %135 = vmatpush.bf16.msra.mxu0 %v116
    %136 = vmatpush.bf16.msra.mxu0 %v115
    %137 = vmatpush.bf16.msra.mxu0 %v114
    %138 = vmatmul.bf16.gmra.mxu0 %v65
    %v139 = vpop.f32.mrf.mxu0
    %v140 = vadd.f32 0.0, %v139
    %v141 = vpop.f32.mrf.mxu0
    %142 = vdwg.mxu0
    %v143 = vpack.c.bf16 %v140, %v140
    %s144 = sld [smem:[#allocation2]]
    %v145 = vstv %s144
    %v146 = vld [vmem:[#allocation5] sm:$0xf]
    %v147 = vld [vmem:[#allocation5 + $0x10] sm:$0xf]
    %v148 = vld [vmem:[#allocation5 + $0x20] sm:$0xf]
    %v149 = vld [vmem:[#allocation5 + $0x30] sm:$0xf]
    %v150 = vld [vmem:[#allocation5 + $0x40] sm:$0xf]
    %v151 = vld [vmem:[#allocation5 + $0x50] sm:$0xf]
    %v152 = vld [vmem:[#allocation5 + $0x60] sm:$0xf]
    %v153 = vld [vmem:[#allocation5 + $0x70] sm:$0xf]
    %v154 = vld [vmem:[#allocation5 + $0x80] sm:$0xf]
    %v155 = vld [vmem:[#allocation5 + $0x90] sm:$0xf]
    %v156 = vld [vmem:[#allocation5 + $0xa0] sm:$0xf]
    %v157 = vld [vmem:[#allocation5 + $0xb0] sm:$0xf]
    %v158 = vld [vmem:[#allocation5 + $0xc0] sm:$0xf]
    %v159 = vld [vmem:[#allocation5 + $0xd0] sm:$0xf]
    %v160 = vld [vmem:[#allocation5 + $0xe0] sm:$0xf]
    %v161 = vld [vmem:[#allocation5 + $0xf0] sm:$0xf]
    %v162 = vld [vmem:[%s3] sm:$0x1]
    %v164 = vperm.slane %v162, 0
    %v182 = vunpack.c.l.b16 %v146
    %v183 = vunpack.c.l.b16 %v147
    %v184 = vunpack.c.l.b16 %v148
    %v185 = vunpack.c.l.b16 %v149
    %v186 = vunpack.c.l.b16 %v150
    %v187 = vunpack.c.l.b16 %v151
    %v188 = vunpack.c.l.b16 %v152
    %v189 = vunpack.c.l.b16 %v153
    %v190 = vunpack.c.l.b16 %v154
    %v191 = vunpack.c.l.b16 %v155
    %v192 = vunpack.c.l.b16 %v156
    %v193 = vunpack.c.l.b16 %v157
    %v194 = vunpack.c.l.b16 %v158
    %v195 = vunpack.c.l.b16 %v159
    %v196 = vunpack.c.l.b16 %v160
    %v197 = vunpack.c.l.b16 %v161
    %v198 = vpack.c.b16 %v183, %v182
    %v199 = vpack.c.b16 %v185, %v184
    %v200 = vpack.c.b16 %v187, %v186
    %v201 = vpack.c.b16 %v189, %v188
    %v202 = vpack.c.b16 %v191, %v190
    %v203 = vpack.c.b16 %v193, %v192
    %v204 = vpack.c.b16 %v195, %v194
    %v205 = vpack.c.b16 %v197, %v196
    %214 = vmatpush.bf16.msra.mxu0 %v205
    %215 = vmatpush.bf16.msra.mxu0 %v204
    %216 = vmatpush.bf16.msra.mxu0 %v203
    %217 = vmatpush.bf16.msra.mxu0 %v202
    %218 = vmatpush.bf16.msra.mxu0 %v201
    %219 = vmatpush.bf16.msra.mxu0 %v200
    %220 = vmatpush.bf16.msra.mxu0 %v199
    %221 = vmatpush.bf16.msra.mxu0 %v198
    %222 = vmatmul.bf16.gmra.mxu0 %v143
    %v223 = vpop.f32.mrf.mxu0
    %v224 = vadd.f32 %v164, %v223
    %v225 = vpop.f32.mrf.mxu0
    %226 = vdwg.mxu0
    %v227 = vtanh.pop %v224
    %v228 = vld [vmem:[%s4] sm:$0x1]
    %v230 = vperm.slane %v228, 0
    %v232 = vmul.f32 %v227, %v230
    %233 = vadd.xlane.f32.xlu0 %v232
    %v234 = vpop.xlane.xlu0 %233
    %v235 = vadd.f32 %v145, %v234
    %v236 = vld [vmem:[#allocation5 + $0x4] sm:$0xf]
    %v237 = vld [vmem:[#allocation5 + $0x14] sm:$0xf]
    %v238 = vld [vmem:[#allocation5 + $0x24] sm:$0xf]
    %v239 = vld [vmem:[#allocation5 + $0x34] sm:$0xf]
    %v240 = vld [vmem:[#allocation5 + $0x44] sm:$0xf]
    %v241 = vld [vmem:[#allocation5 + $0x54] sm:$0xf]
    %v242 = vld [vmem:[#allocation5 + $0x64] sm:$0xf]
    %v243 = vld [vmem:[#allocation5 + $0x74] sm:$0xf]
    %v244 = vld [vmem:[#allocation5 + $0x84] sm:$0xf]
    %v245 = vld [vmem:[#allocation5 + $0x94] sm:$0xf]
    %v246 = vld [vmem:[#allocation5 + $0xa4] sm:$0xf]
    %v247 = vld [vmem:[#allocation5 + $0xb4] sm:$0xf]
    %v248 = vld [vmem:[#allocation5 + $0xc4] sm:$0xf]
    %v249 = vld [vmem:[#allocation5 + $0xd4] sm:$0xf]
    %v250 = vld [vmem:[#allocation5 + $0xe4] sm:$0xf]
    %v251 = vld [vmem:[#allocation5 + $0xf4] sm:$0xf]
    %v252 = vld [vmem:[%s3 + $0x1] sm:$0x1]
    %v254 = vperm.slane %v252, 0
    %v272 = vunpack.c.l.b16 %v236
    %v273 = vunpack.c.l.b16 %v237
    %v274 = vunpack.c.l.b16 %v238
    %v275 = vunpack.c.l.b16 %v239
    %v276 = vunpack.c.l.b16 %v240
    %v277 = vunpack.c.l.b16 %v241
    %v278 = vunpack.c.l.b16 %v242
    %v279 = vunpack.c.l.b16 %v243
    %v280 = vunpack.c.l.b16 %v244
    %v281 = vunpack.c.l.b16 %v245
    %v282 = vunpack.c.l.b16 %v246
    %v283 = vunpack.c.l.b16 %v247
    %v284 = vunpack.c.l.b16 %v248
    %v285 = vunpack.c.l.b16 %v249
    %v286 = vunpack.c.l.b16 %v250
    %v287 = vunpack.c.l.b16 %v251
    %v288 = vpack.c.b16 %v273, %v272
    %v289 = vpack.c.b16 %v275, %v274
    %v290 = vpack.c.b16 %v277, %v276
    %v291 = vpack.c.b16 %v279, %v278
    %v292 = vpack.c.b16 %v281, %v280
    %v293 = vpack.c.b16 %v283, %v282
    %v294 = vpack.c.b16 %v285, %v284
    %v295 = vpack.c.b16 %v287, %v286
    %304 = vmatpush.bf16.msra.mxu0 %v295
    %305 = vmatpush.bf16.msra.mxu0 %v294
    %306 = vmatpush.bf16.msra.mxu0 %v293
    %307 = vmatpush.bf16.msra.mxu0 %v292
    %308 = vmatpush.bf16.msra.mxu0 %v291
    %309 = vmatpush.bf16.msra.mxu0 %v290
    %310 = vmatpush.bf16.msra.mxu0 %v289
    %311 = vmatpush.bf16.msra.mxu0 %v288
    %312 = vmatmul.bf16.gmra.mxu0 %v143
    %v313 = vpop.f32.mrf.mxu0
    %v314 = vadd.f32 %v254, %v313
    %v315 = vpop.f32.mrf.mxu0
    %316 = vdwg.mxu0
    %v317 = vtanh.pop %v314
    %v318 = vld [vmem:[%s4 + $0x1] sm:$0x1]
    %v320 = vperm.slane %v318, 0
    %v322 = vmul.f32 %v317, %v320
    %323 = vadd.xlane.f32.xlu0 %v322
    %v324 = vpop.xlane.xlu0 %323
    %v325 = vadd.f32 %v235, %v324
    %v326 = vld [vmem:[#allocation5 + $0x8] sm:$0xf]
    %v327 = vld [vmem:[#allocation5 + $0x18] sm:$0xf]
    %v328 = vld [vmem:[#allocation5 + $0x28] sm:$0xf]
    %v329 = vld [vmem:[#allocation5 + $0x38] sm:$0xf]
    %v330 = vld [vmem:[#allocation5 + $0x48] sm:$0xf]
    %v331 = vld [vmem:[#allocation5 + $0x58] sm:$0xf]
    %v332 = vld [vmem:[#allocation5 + $0x68] sm:$0xf]
    %v333 = vld [vmem:[#allocation5 + $0x78] sm:$0xf]
    %v334 = vld [vmem:[#allocation5 + $0x88] sm:$0xf]
    %v335 = vld [vmem:[#allocation5 + $0x98] sm:$0xf]
    %v336 = vld [vmem:[#allocation5 + $0xa8] sm:$0xf]
    %v337 = vld [vmem:[#allocation5 + $0xb8] sm:$0xf]
    %v338 = vld [vmem:[#allocation5 + $0xc8] sm:$0xf]
    %v339 = vld [vmem:[#allocation5 + $0xd8] sm:$0xf]
    %v340 = vld [vmem:[#allocation5 + $0xe8] sm:$0xf]
    %v341 = vld [vmem:[#allocation5 + $0xf8] sm:$0xf]
    %v342 = vld [vmem:[%s3 + $0x2] sm:$0x1]
    %v344 = vperm.slane %v342, 0
    %v362 = vunpack.c.l.b16 %v326
    %v363 = vunpack.c.l.b16 %v327
    %v364 = vunpack.c.l.b16 %v328
    %v365 = vunpack.c.l.b16 %v329
    %v366 = vunpack.c.l.b16 %v330
    %v367 = vunpack.c.l.b16 %v331
    %v368 = vunpack.c.l.b16 %v332
    %v369 = vunpack.c.l.b16 %v333
    %v370 = vunpack.c.l.b16 %v334
    %v371 = vunpack.c.l.b16 %v335
    %v372 = vunpack.c.l.b16 %v336
    %v373 = vunpack.c.l.b16 %v337
    %v374 = vunpack.c.l.b16 %v338
    %v375 = vunpack.c.l.b16 %v339
    %v376 = vunpack.c.l.b16 %v340
    %v377 = vunpack.c.l.b16 %v341
    %v378 = vpack.c.b16 %v363, %v362
    %v379 = vpack.c.b16 %v365, %v364
    %v380 = vpack.c.b16 %v367, %v366
    %v381 = vpack.c.b16 %v369, %v368
    %v382 = vpack.c.b16 %v371, %v370
    %v383 = vpack.c.b16 %v373, %v372
    %v384 = vpack.c.b16 %v375, %v374
    %v385 = vpack.c.b16 %v377, %v376
    %394 = vmatpush.bf16.msra.mxu0 %v385
    %395 = vmatpush.bf16.msra.mxu0 %v384
    %396 = vmatpush.bf16.msra.mxu0 %v383
    %397 = vmatpush.bf16.msra.mxu0 %v382
    %398 = vmatpush.bf16.msra.mxu0 %v381
    %399 = vmatpush.bf16.msra.mxu0 %v380
    %400 = vmatpush.bf16.msra.mxu0 %v379
    %401 = vmatpush.bf16.msra.mxu0 %v378
    %402 = vmatmul.bf16.gmra.mxu0 %v143
    %v403 = vpop.f32.mrf.mxu0
    %v404 = vadd.f32 %v344, %v403
    %v405 = vpop.f32.mrf.mxu0
    %406 = vdwg.mxu0
    %v407 = vtanh.pop %v404
    %v408 = vld [vmem:[%s4 + $0x2] sm:$0x1]
    %v410 = vperm.slane %v408, 0
    %v412 = vmul.f32 %v407, %v410
    %413 = vadd.xlane.f32.xlu0 %v412
    %v414 = vpop.xlane.xlu0 %413
    %v415 = vadd.f32 %v325, %v414
    %v416 = vld [vmem:[#allocation5 + $0xc] sm:$0xf]
    %v417 = vld [vmem:[#allocation5 + $0x1c] sm:$0xf]
    %v418 = vld [vmem:[#allocation5 + $0x2c] sm:$0xf]
    %v419 = vld [vmem:[#allocation5 + $0x3c] sm:$0xf]
    %v420 = vld [vmem:[#allocation5 + $0x4c] sm:$0xf]
    %v421 = vld [vmem:[#allocation5 + $0x5c] sm:$0xf]
    %v422 = vld [vmem:[#allocation5 + $0x6c] sm:$0xf]
    %v423 = vld [vmem:[#allocation5 + $0x7c] sm:$0xf]
    %v424 = vld [vmem:[#allocation5 + $0x8c] sm:$0xf]
    %v425 = vld [vmem:[#allocation5 + $0x9c] sm:$0xf]
    %v426 = vld [vmem:[#allocation5 + $0xac] sm:$0xf]
    %v427 = vld [vmem:[#allocation5 + $0xbc] sm:$0xf]
    %v428 = vld [vmem:[#allocation5 + $0xcc] sm:$0xf]
    %v429 = vld [vmem:[#allocation5 + $0xdc] sm:$0xf]
    %v430 = vld [vmem:[#allocation5 + $0xec] sm:$0xf]
    %v431 = vld [vmem:[#allocation5 + $0xfc] sm:$0xf]
    %v432 = vld [vmem:[%s3 + $0x3] sm:$0x1]
    %v434 = vperm.slane %v432, 0
    %v452 = vunpack.c.l.b16 %v416
    %v453 = vunpack.c.l.b16 %v417
    %v454 = vunpack.c.l.b16 %v418
    %v455 = vunpack.c.l.b16 %v419
    %v456 = vunpack.c.l.b16 %v420
    %v457 = vunpack.c.l.b16 %v421
    %v458 = vunpack.c.l.b16 %v422
    %v459 = vunpack.c.l.b16 %v423
    %v460 = vunpack.c.l.b16 %v424
    %v461 = vunpack.c.l.b16 %v425
    %v462 = vunpack.c.l.b16 %v426
    %v463 = vunpack.c.l.b16 %v427
    %v464 = vunpack.c.l.b16 %v428
    %v465 = vunpack.c.l.b16 %v429
    %v466 = vunpack.c.l.b16 %v430
    %v467 = vunpack.c.l.b16 %v431
    %v468 = vpack.c.b16 %v453, %v452
    %v469 = vpack.c.b16 %v455, %v454
    %v470 = vpack.c.b16 %v457, %v456
    %v471 = vpack.c.b16 %v459, %v458
    %v472 = vpack.c.b16 %v461, %v460
    %v473 = vpack.c.b16 %v463, %v462
    %v474 = vpack.c.b16 %v465, %v464
    %v475 = vpack.c.b16 %v467, %v466
    %484 = vmatpush.bf16.msra.mxu0 %v475
    %485 = vmatpush.bf16.msra.mxu0 %v474
    %486 = vmatpush.bf16.msra.mxu0 %v473
    %487 = vmatpush.bf16.msra.mxu0 %v472
    %488 = vmatpush.bf16.msra.mxu0 %v471
    %489 = vmatpush.bf16.msra.mxu0 %v470
    %490 = vmatpush.bf16.msra.mxu0 %v469
    %491 = vmatpush.bf16.msra.mxu0 %v468
    %492 = vmatmul.bf16.gmra.mxu0 %v143
    %v493 = vpop.f32.mrf.mxu0
    %v494 = vadd.f32 %v434, %v493
    %v495 = vpop.f32.mrf.mxu0
    %496 = vdwg.mxu0
    %v497 = vtanh.pop %v494
    %v498 = vld [vmem:[%s4 + $0x3] sm:$0x1]
    %v500 = vperm.slane %v498, 0
    %v502 = vmul.f32 %v497, %v500
    %503 = vadd.xlane.f32.xlu0 %v502
    %v504 = vpop.xlane.xlu0 %503
    %v505 = vadd.f32 %v415, %v504
    %vm506 = vcmask 7168
    %507 = vst.msk [vmem:[%s6] sm:$0xff] %vm506, %v505
    // Predicated region
    $region34: #{network_arm_forward.1} parent=1 // pred_check
      _
    $region35: #{network_arm_forward.1} parent=1 // pred_check_branch
      %509 = sbr.rel (0) target = $region37
    $region36: #{network_arm_forward.1} parent=1 // pred_region
      _
    $region37: #{network_arm_forward.1} parent=1 // pred_fallthru
      _
    // Predicated region
    $region38: #{network_arm_forward.1} parent=1 // pred_check
      _
    $region39: #{network_arm_forward.1} parent=1 // pred_check_branch
      %511 = sbr.rel (0) target = $region41
    $region40: #{network_arm_forward.1} parent=1 // pred_region
      _
    $region41: #{network_arm_forward.1} parent=1 // pred_fallthru
      _
    %512 = vsyncpa [#allocation4], 1
    %513 = vsyncpa [#allocation6], 1

</llo_original>
